<compile_context>
chip_gen: v5e
topology: v5e:2x2
jax: 0.10.0
libtpu: 0.0.40
codegen_flags: <defaults>
</compile_context>

<pallas_src>
import functools
import math

import jax
import jax.numpy as jnp
from jax.experimental import pallas as pl
from jax.experimental.pallas import tpu as pltpu


# ---------------------------------------------------------------------------
# Packed weight-slab layout (shared by offline prep and the kernel)
# ---------------------------------------------------------------------------
def _round_up(x, m):
    return ((x + m - 1) // m) * m


def _slab_layout(E, H, V):
    """Row offsets inside the packed (rows, lanes) weight slab.

    Every section starts on an 8-row (f32 sublane) boundary so in-kernel static
    ref slices are tile-aligned.
    """
    r_wg = 0                                # (E+H, 4H) fused [W_ih | W_hh].T, gate order i,f,g,o
    r_bg = _round_up(r_wg + E + H, 8)       # (1, 4H)   b_ih + b_hh
    r_wo = _round_up(r_bg + 1, 8)           # (2H, V)   fused (W_out @ W_comb).T
    r_bo = _round_up(r_wo + 2 * H, 8)       # (1, V)    fused output bias
    r_at = _round_up(r_bo + 1, 8)           # (1, 2H+1) [wa_key | wa_enc | b_attn]
    rows = _round_up(r_at + 1, 8)
    lanes = _round_up(max(4 * H, V, 2 * H + 1), 128)
    return dict(r_wg=r_wg, r_bg=r_bg, r_wo=r_wo, r_bo=r_bo, r_at=r_at,
                rows=rows, lanes=lanes)


# ---------------------------------------------------------------------------
# Pallas kernel: full decoder step (LSTM cell + attention + fused projection)
# ---------------------------------------------------------------------------
def attention_decoder_kernel(xh_ref, c0_ref, enc_ref, w_ref, out_ref,
                             *, E, H, V, S, L, slots):
    xh = xh_ref[...]                 # (B, E+H)  [embedded input | previous hidden]
    c0 = c0_ref[...]                 # (B, H)
    enc = enc_ref[...]               # (B, S, H)

    # ---- LSTM cell: all four gates in ONE MXU pass (B, E+H) @ (E+H, 4H).
    w_gates = w_ref[L["r_wg"]:L["r_wg"] + E + H, :4 * H]          # (E+H, 4H)
    b_gates = w_ref[L["r_bg"]:L["r_bg"] + 1, :4 * H]              # (1, 4H)
    gates = jnp.dot(xh, w_gates, preferred_element_type=jnp.float32) + b_gates
    i_g = jax.nn.sigmoid(gates[:, 0 * H:1 * H])
    f_g = jax.nn.sigmoid(gates[:, 1 * H:2 * H])
    g_g = jnp.tanh(gates[:, 2 * H:3 * H])
    o_g = jax.nn.sigmoid(gates[:, 3 * H:4 * H])
    c1 = f_g * c0 + i_g * g_g                                     # (B, H)
    h1 = o_g * jnp.tanh(c1)                                       # (B, H)

    # ---- additive attention score; the (1, 2H) attn weight is pre-split so no
    #      concat of [h1, enc] is needed.
    # NOTE: the reviewed MXU variants ((B,H)@(H,1) and (B*S,H)@(H,1)) were evaluated;
    # at S=8, H=32 the VPU multiply + lane reduce is a handful of ops, keeps the MXU
    # pass count minimal (v5e), and avoids a sublane->lane relayout of a (B*S,1) result.
    wa_key = w_ref[L["r_at"]:L["r_at"] + 1, 0:H]                  # (1, H)
    wa_enc = w_ref[L["r_at"]:L["r_at"] + 1, H:2 * H]              # (1, H)
    b_attn = w_ref[L["r_at"]:L["r_at"] + 1, 2 * H:2 * H + 1]      # (1, 1)
    key_term = jnp.sum(h1 * wa_key, axis=1, keepdims=True)        # (B, 1)
    enc_term = jnp.sum(enc * wa_enc[None, :, :], axis=2)          # (B, S)
    score = jnp.tanh(key_term + enc_term + b_attn)                # (B, S)

    # ---- exact softmax over the encoder-sequence axis (approx reciprocal removed:
    #      attn_w is a returned output and exact divide is free at this size).
    m = jnp.max(score, axis=1, keepdims=True)
    e = jnp.exp(score - m)
    attn_w = e / jnp.sum(e, axis=1, keepdims=True)                # (B, S)

    # ---- context = bmm(attn_w, enc)
    ctx = jnp.sum(attn_w[:, :, None] * enc, axis=1)               # (B, H)

    # ---- fused attn_combine + output Linear: ONE MXU pass (B, 2H) @ (2H, V).
    cat = jnp.concatenate([ctx, h1], axis=1)                      # (B, 2H)
    w_out = w_ref[L["r_wo"]:L["r_wo"] + 2 * H, :V]                # (2H, V)
    b_out = w_ref[L["r_bo"]:L["r_bo"] + 1, :V]                    # (1, V)
    out = jnp.dot(cat, w_out, preferred_element_type=jnp.float32) + b_out   # (B, V)

    # ---- static slice stores into 128-lane-aligned slots (no in-kernel concat).
    out_ref[:, slots["out"]:slots["out"] + V] = out
    out_ref[:, slots["h1"]:slots["h1"] + H] = h1
    out_ref[:, slots["c1"]:slots["c1"] + H] = c1
    out_ref[:, slots["attn"]:slots["attn"] + S] = attn_w


# ---------------------------------------------------------------------------
# One-time weight preparation: fuse, transpose and pack into a single f32 slab
# ---------------------------------------------------------------------------
def prepare_decoder_weights(weights):
    w_ih = weights["w_ih"]            # (4H, E)  PyTorch layout, gate order i, f, g, o
    w_hh = weights["w_hh"]            # (4H, H)
    H = w_hh.shape[1]
    E = w_ih.shape[1]
    V = weights["w_out"].shape[0]
    L = _slab_layout(E, H, V)
    hi = jax.lax.Precision.HIGHEST    # offline fusion in full f32

    # fused gate weight: [x | h0] @ w_gates == x @ W_ih.T + h0 @ W_hh.T
    w_gates = jnp.concatenate([w_ih, w_hh], axis=1).T                     # (E+H, 4H)
    b_gates = (weights["b_ih"] + weights["b_hh"]).reshape(1, 4 * H)

    wa = weights["w_attn"]                                                # (1, 2H)
    b_attn = weights["b_attn"].reshape(1, 1)

    # fuse attn_combine (2H->H) with output (H->V): no nonlinearity in between.
    w_fused = jnp.dot(weights["w_out"], weights["w_comb"], precision=hi).T       # (2H, V)
    b_fused = (jnp.dot(weights["b_comb"], weights["w_out"].T, precision=hi)
               + weights["b_out"]).reshape(1, V)

    slab = jnp.zeros((L["rows"], L["lanes"]), jnp.float32)
    slab = slab.at[L["r_wg"]:L["r_wg"] + E + H, :4 * H].set(w_gates)
    slab = slab.at[L["r_bg"], :4 * H].set(b_gates[0])
    slab = slab.at[L["r_wo"]:L["r_wo"] + 2 * H, :V].set(w_fused)
    slab = slab.at[L["r_bo"], :V].set(b_fused[0])
    slab = slab.at[L["r_at"], :2 * H].set(wa[0])              # [wa_key | wa_enc]
    slab = slab.at[L["r_at"], 2 * H].set(b_attn[0, 0])
    return {"slab": slab, "embed_size": E, "hidden_size": H, "vocab_size": V}


# ---------------------------------------------------------------------------
# Wrapper: PyTorch layouts in / out, Pallas kernel inside
# ---------------------------------------------------------------------------
def attention_decoder_forward(X, hidden_state, encoder_outputs, prepared):
    """X: (1, B, E); hidden_state: (h0, c0) each (1, B, H); encoder_outputs: (B, S, H)."""
    h0, c0 = hidden_state
    B = X.shape[1]
    E = prepared["embed_size"]
    H = prepared["hidden_size"]
    V = prepared["vocab_size"]
    S = encoder_outputs.shape[1]
    L = _slab_layout(E, H, V)

    # 128-lane-aligned output slots: [out | h1 | c1 | attn_w]
    slot = _round_up(max(V, H, S), 128)
    slots = {"out": 0, "h1": slot, "c1": 2 * slot, "attn": 3 * slot}
    width = 4 * slot

    # concat input and previous hidden so the kernel needs a single gate matmul
    xh = jnp.concatenate([X[0], h0[0]], axis=1).astype(jnp.float32)   # (B, E+H)

    kernel = functools.partial(attention_decoder_kernel,
                               E=E, H=H, V=V, S=S, L=L, slots=slots)
    vmem = pl.BlockSpec(memory_space=pltpu.MemorySpace.VMEM)

    slab = pl.pallas_call(
        kernel,
        out_shape=jax.ShapeDtypeStruct((B, width), jnp.float32),
        in_specs=[vmem, vmem, vmem, vmem],        # 4 input DMAs (was 13)
        out_specs=vmem,
    )(xh, c0[0], encoder_outputs, prepared["slab"])

    # unpack the slotted output slab (free layout plumbing in the wrapper)
    out = slab[:, slots["out"]:slots["out"] + V]
    h1 = slab[:, slots["h1"]:slots["h1"] + H]
    c1 = slab[:, slots["c1"]:slots["c1"] + H]
    attn_w = slab[:, slots["attn"]:slots["attn"] + S]

    # back to PyTorch conventions
    return out[None, :, :], (h1[None, :, :], c1[None, :, :]), attn_w


# ---------------------------------------------------------------------------
# Pure-JAX reference (original un-fused math) for verification
# ---------------------------------------------------------------------------
def reference_forward(X, hidden_state, encoder_outputs, weights):
    h0, c0 = hidden_state
    x2, h02, c02 = X[0], h0[0], c0[0]
    H = h02.shape[1]

    gates = (x2 @ weights["w_ih"].T + weights["b_ih"]
             + h02 @ weights["w_hh"].T + weights["b_hh"])
    i_g = jax.nn.sigmoid(gates[:, 0:H])
    f_g = jax.nn.sigmoid(gates[:, H:2 * H])
    g_g = jnp.tanh(gates[:, 2 * H:3 * H])
    o_g = jax.nn.sigmoid(gates[:, 3 * H:4 * H])
    c1 = f_g * c02 + i_g * g_g
    h1 = o_g * jnp.tanh(c1)

    enc = encoder_outputs
    key_exp = jnp.broadcast_to(h1[:, None, :], enc.shape)
    combined = jnp.concatenate([key_exp, enc], axis=2)
    score = jnp.tanh(combined @ weights["w_attn"].T + weights["b_attn"])[..., 0]
    attn_w = jax.nn.softmax(score, axis=1)
    ctx = jnp.einsum("bs,bsh->bh", attn_w, enc)
    final = (jnp.concatenate([ctx, h1], axis=1) @ weights["w_comb"].T
             + weights["b_comb"])
    out = final @ weights["w_out"].T + weights["b_out"]
    return out[None], (h1[None], c1[None]), attn_w


# ---------------------------------------------------------------------------
# Deterministic parameter / input construction and test
# ---------------------------------------------------------------------------
def make_weights(key, E, H, V):
    ks = jax.random.split(key, 12)

    def u(k, shape, fan_in):
        bound = 1.0 / math.sqrt(fan_in)
        return jax.random.uniform(k, shape, jnp.float32, -bound, bound)

    return {
        # LSTM (PyTorch init: U(-1/sqrt(H), 1/sqrt(H)))
        "w_ih": u(ks[0], (4 * H, E), H),
        "w_hh": u(ks[1], (4 * H, H), H),
        "b_ih": u(ks[2], (4 * H,), H),
        "b_hh": u(ks[3], (4 * H,), H),
        # attn: Linear(2H -> 1)
        "w_attn": u(ks[4], (1, 2 * H), 2 * H),
        "b_attn": u(ks[5], (1,), 2 * H),
        # attn_combine: Linear(2H -> H)
        "w_comb": u(ks[6], (H, 2 * H), 2 * H),
        "b_comb": u(ks[7], (H,), 2 * H),
        # output: Linear(H -> V)
        "w_out": u(ks[8], (V, H), H),
        "b_out": u(ks[9], (V,), H),
    }


if __name__ == "__main__":
    # batch=8 (= f32 sublane count, per perf review), embed, hidden, vocab, enc seq len
    B, E, H, V, S = 8, 16, 32, 64, 8
    key = jax.random.PRNGKey(0)
    k_w, k_x, k_h, k_c, k_e = jax.random.split(key, 5)

    weights = make_weights(k_w, E, H, V)
    X = jax.random.normal(k_x, (1, B, E), jnp.float32)     # (seq=1, B, E)
    h0 = jax.random.normal(k_h, (1, B, H), jnp.float32)    # (num_layers=1, B, H)
    c0 = jax.random.normal(k_c, (1, B, H), jnp.float32)
    enc = jax.random.normal(k_e, (B, S, H), jnp.float32)   # encoder outputs

    prepared = prepare_decoder_weights(weights)            # one-time weight prep / packing
    forward = jax.jit(functools.partial(attention_decoder_forward, prepared=prepared))

    out, (h1, c1), attn_w = forward(X, (h0, c0), enc)
    jax.block_until_ready((out, h1, c1, attn_w))

    ref_out, (ref_h1, ref_c1), ref_w = reference_forward(X, (h0, c0), enc, weights)

    # h1/c1/attn_w: same math (exact softmax now) -> tight tolerance.
    # out goes through the offline-fused combine+output linear -> slightly looser.
    assert jnp.allclose(h1, ref_h1, atol=1e-4, rtol=1e-4)
    assert jnp.allclose(c1, ref_c1, atol=1e-4, rtol=1e-4)
    assert jnp.allclose(attn_w, ref_w, atol=1e-4, rtol=1e-4)
    assert jnp.allclose(out, ref_out, atol=1e-3, rtol=1e-3)

    print("KERNEL_OK")
</pallas_src>

<mosaic_0001>
module attributes {stable_mosaic.version = 11 : i64} {
  func.func @attention_decoder_kernel(%arg0: memref<8x48xf32, #tpu.memory_space<vmem>>, %arg1: memref<8x32xf32, #tpu.memory_space<vmem>>, %arg2: memref<8x8x32xf32, #tpu.memory_space<vmem>>, %arg3: memref<136x128xf32, #tpu.memory_space<vmem>>, %arg4: memref<8x512xf32, #tpu.memory_space<vmem>>) attributes {dimension_semantics = [], scalar_prefetch = 0 : i64, scratch_operands = 0 : i64, tpu.core_type = #tpu.core_type<tc>} {
    %c0 = arith.constant 0 : index
    %c0_0 = arith.constant 0 : index
    %0 = vector.load %arg0[%c0, %c0_0] : memref<8x48xf32, #tpu.memory_space<vmem>>, vector<8x48xf32>
    %c0_1 = arith.constant 0 : index
    %c0_2 = arith.constant 0 : index
    %1 = vector.load %arg1[%c0_1, %c0_2] : memref<8x32xf32, #tpu.memory_space<vmem>>, vector<8x32xf32>
    %c0_3 = arith.constant 0 : index
    %c0_4 = arith.constant 0 : index
    %c0_5 = arith.constant 0 : index
    %2 = vector.load %arg2[%c0_3, %c0_4, %c0_5] : memref<8x8x32xf32, #tpu.memory_space<vmem>>, vector<8x8x32xf32>
    %c0_6 = arith.constant 0 : index
    %c0_7 = arith.constant 0 : index
    %3 = vector.load %arg3[%c0_6, %c0_7] : memref<136x128xf32, #tpu.memory_space<vmem>>, vector<48x128xf32>
    %c48 = arith.constant 48 : index
    %c0_8 = arith.constant 0 : index
    %4 = vector.load %arg3[%c48, %c0_8] : memref<136x128xf32, #tpu.memory_space<vmem>>, vector<1x128xf32>
    %cst = arith.constant dense<0.000000e+00> : vector<8x128xf32>
    %5 = tpu.matmul %0, %3, %cst {dimension_numbers = #tpu.dot_dimension_numbers<[1], [0], [0], [1], [0, 0, 1, 1], [], []>} : vector<8x48xf32>, vector<48x128xf32>, vector<8x128xf32> -> vector<8x128xf32>
    %6 = vector.broadcast %4 : vector<1x128xf32> to vector<8x128xf32>
    %7 = arith.addf %5, %6 : vector<8x128xf32>
    %8 = vector.extract_strided_slice %7 {offsets = [0, 0], sizes = [8, 32], strides = [1, 1]} : vector<8x128xf32> to vector<8x32xf32>
    %9 = arith.negf %8 : vector<8x32xf32>
    %10 = math.exp %9 : vector<8x32xf32>
    %cst_9 = arith.constant 1.000000e+00 : f32
    %11 = vector.broadcast %cst_9 : f32 to vector<8x32xf32>
    %12 = arith.addf %11, %10 : vector<8x32xf32>
    %13 = arith.divf %11, %12 : vector<8x32xf32>
    %14 = vector.extract_strided_slice %7 {offsets = [0, 32], sizes = [8, 32], strides = [1, 1]} : vector<8x128xf32> to vector<8x32xf32>
    %15 = arith.negf %14 : vector<8x32xf32>
    %16 = math.exp %15 : vector<8x32xf32>
    %cst_10 = arith.constant 1.000000e+00 : f32
    %17 = vector.broadcast %cst_10 : f32 to vector<8x32xf32>
    %18 = arith.addf %17, %16 : vector<8x32xf32>
    %19 = arith.divf %17, %18 : vector<8x32xf32>
    %20 = vector.extract_strided_slice %7 {offsets = [0, 64], sizes = [8, 32], strides = [1, 1]} : vector<8x128xf32> to vector<8x32xf32>
    %21 = math.tanh %20 : vector<8x32xf32>
    %22 = vector.extract_strided_slice %7 {offsets = [0, 96], sizes = [8, 32], strides = [1, 1]} : vector<8x128xf32> to vector<8x32xf32>
    %23 = arith.negf %22 : vector<8x32xf32>
    %24 = math.exp %23 : vector<8x32xf32>
    %cst_11 = arith.constant 1.000000e+00 : f32
    %25 = vector.broadcast %cst_11 : f32 to vector<8x32xf32>
    %26 = arith.addf %25, %24 : vector<8x32xf32>
    %27 = arith.divf %25, %26 : vector<8x32xf32>
    %28 = arith.mulf %19, %1 : vector<8x32xf32>
    %29 = arith.mulf %13, %21 : vector<8x32xf32>
    %30 = arith.addf %28, %29 : vector<8x32xf32>
    %31 = math.tanh %30 : vector<8x32xf32>
    %32 = arith.mulf %27, %31 : vector<8x32xf32>
    %c128 = arith.constant 128 : index
    %c0_12 = arith.constant 0 : index
    %33 = vector.load %arg3[%c128, %c0_12] : memref<136x128xf32, #tpu.memory_space<vmem>>, vector<1x32xf32>
    %c128_13 = arith.constant 128 : index
    %c32 = arith.constant 32 : index
    %34 = vector.load %arg3[%c128_13, %c32] : memref<136x128xf32, #tpu.memory_space<vmem>>, vector<1x32xf32>
    %c128_14 = arith.constant 128 : index
    %c64 = arith.constant 64 : index
    %35 = vector.load %arg3[%c128_14, %c64] : memref<136x128xf32, #tpu.memory_space<vmem>>, vector<1x1xf32>
    %36 = vector.broadcast %33 : vector<1x32xf32> to vector<8x32xf32>
    %37 = arith.mulf %32, %36 : vector<8x32xf32>
    %cst_15 = arith.constant dense<0.000000e+00> : vector<8xf32>
    %38 = vector.multi_reduction <add>, %37, %cst_15 [1] : vector<8x32xf32> to vector<8xf32>
    %39 = vector.shape_cast %38 : vector<8xf32> to vector<8x1xf32>
    %40 = vector.shape_cast %34 : vector<1x32xf32> to vector<1x1x32xf32>
    %41 = vector.broadcast %40 : vector<1x1x32xf32> to vector<8x8x32xf32>
    %42 = arith.mulf %2, %41 : vector<8x8x32xf32>
    %cst_16 = arith.constant dense<0.000000e+00> : vector<8x8xf32>
    %43 = vector.multi_reduction <add>, %42, %cst_16 [2] : vector<8x8x32xf32> to vector<8x8xf32>
    %44 = vector.broadcast %39 : vector<8x1xf32> to vector<8x8xf32>
    %45 = arith.addf %44, %43 : vector<8x8xf32>
    %46 = vector.broadcast %35 : vector<1x1xf32> to vector<8x8xf32>
    %47 = arith.addf %45, %46 : vector<8x8xf32>
    %48 = math.tanh %47 : vector<8x8xf32>
    %cst_17 = arith.constant dense<0xFF800000> : vector<8xf32>
    %49 = vector.multi_reduction <maximumf>, %48, %cst_17 [1] : vector<8x8xf32> to vector<8xf32>
    %50 = vector.shape_cast %49 : vector<8xf32> to vector<8x1xf32>
    %51 = vector.broadcast %50 : vector<8x1xf32> to vector<8x8xf32>
    %52 = arith.subf %48, %51 : vector<8x8xf32>
    %53 = math.exp %52 : vector<8x8xf32>
    %cst_18 = arith.constant dense<0.000000e+00> : vector<8xf32>
    %54 = vector.multi_reduction <add>, %53, %cst_18 [1] : vector<8x8xf32> to vector<8xf32>
    %55 = vector.shape_cast %54 : vector<8xf32> to vector<8x1xf32>
    %56 = vector.broadcast %55 : vector<8x1xf32> to vector<8x8xf32>
    %57 = arith.divf %53, %56 : vector<8x8xf32>
    %58 = vector.shape_cast %57 : vector<8x8xf32> to vector<8x8x1xf32>
    %59 = vector.broadcast %58 : vector<8x8x1xf32> to vector<8x8x32xf32>
    %60 = arith.mulf %59, %2 : vector<8x8x32xf32>
    %cst_19 = arith.constant dense<0.000000e+00> : vector<8x32xf32>
    %61 = vector.multi_reduction <add>, %60, %cst_19 [1] : vector<8x8x32xf32> to vector<8x32xf32>
    %62 = tpu.concatenate %61, %32 in 1 : vector<8x32xf32>, vector<8x32xf32> -> vector<8x64xf32>
    %c56 = arith.constant 56 : index
    %c0_20 = arith.constant 0 : index
    %63 = vector.load %arg3[%c56, %c0_20] : memref<136x128xf32, #tpu.memory_space<vmem>>, vector<64x64xf32>
    %c120 = arith.constant 120 : index
    %c0_21 = arith.constant 0 : index
    %64 = vector.load %arg3[%c120, %c0_21] : memref<136x128xf32, #tpu.memory_space<vmem>>, vector<1x64xf32>
    %cst_22 = arith.constant dense<0.000000e+00> : vector<8x64xf32>
    %65 = tpu.matmul %62, %63, %cst_22 {dimension_numbers = #tpu.dot_dimension_numbers<[1], [0], [0], [1], [0, 0, 1, 1], [], []>} : vector<8x64xf32>, vector<64x64xf32>, vector<8x64xf32> -> vector<8x64xf32>
    %66 = vector.broadcast %64 : vector<1x64xf32> to vector<8x64xf32>
    %67 = arith.addf %65, %66 : vector<8x64xf32>
    %c0_23 = arith.constant 0 : index
    %c0_24 = arith.constant 0 : index
    %68 = vector.load %arg4[%c0_23, %c0_24] : memref<8x512xf32, #tpu.memory_space<vmem>>, vector<8x64xf32>
    tpu.vector_store %arg4[%c0_23, %c0_24], %67 {strides = array<i32>} : memref<8x512xf32, #tpu.memory_space<vmem>>, vector<8x64xf32>,
    %c0_25 = arith.constant 0 : index
    %c128_26 = arith.constant 128 : index
    %69 = vector.load %arg4[%c0_25, %c128_26] : memref<8x512xf32, #tpu.memory_space<vmem>>, vector<8x32xf32>
    tpu.vector_store %arg4[%c0_25, %c128_26], %32 {strides = array<i32>} : memref<8x512xf32, #tpu.memory_space<vmem>>, vector<8x32xf32>,
    %c0_27 = arith.constant 0 : index
    %c256 = arith.constant 256 : index
    %70 = vector.load %arg4[%c0_27, %c256] : memref<8x512xf32, #tpu.memory_space<vmem>>, vector<8x32xf32>
    tpu.vector_store %arg4[%c0_27, %c256], %30 {strides = array<i32>} : memref<8x512xf32, #tpu.memory_space<vmem>>, vector<8x32xf32>,
    %c0_28 = arith.constant 0 : index
    %c384 = arith.constant 384 : index
    %71 = vector.load %arg4[%c0_28, %c384] : memref<8x512xf32, #tpu.memory_space<vmem>>, vector<8x8xf32>
    tpu.vector_store %arg4[%c0_28, %c384], %57 {strides = array<i32>} : memref<8x512xf32, #tpu.memory_space<vmem>>, vector<8x8xf32>,
    return
  }
}

</mosaic_0001>

<llo_original>
// kernel: attention_decoder_forward.1
$region0: #{attention_decoder_forward.1}
  #allocation0 [shape = 'u32[]', space=smem, size = 0x4, offset = 0x4, fixed_abs, tag = 'smem constant byte address 0x4 - core index']
  #allocation1 [shape = 'u32[72,128]{1,0:T(1,128)}', space=vmem, size = 0x9000, scoped, tag = 'internal scratch']
  %s0 = inlined_call_operand.vmem [shape: f32[8,48], index: 0, kind: input, shape index: {}]
  %s1 = inlined_call_operand.vmem [shape: f32[8,32], index: 1, kind: input, shape index: {}]
  %s2 = inlined_call_operand.hbm [shape: f32[8,8,32], index: 2, kind: input, shape index: {}]
  %s3 = inlined_call_operand.hbm [shape: f32[136,128], index: 3, kind: input, shape index: {}]
  %s4 = inlined_call_operand.vmem [shape: f32[8,512], index: 4, kind: output, shape index: {}]
  %s5 = sld [smem:[#allocation0]]
  $region34: #{attention_decoder_forward.1} parent=0
    _
  %s7 = ssub.s32 1, %s5
  %s8 = scalar_select 0, %s7, %s5
  $region1: #{attention_decoder_forward.1} parent=0
    #allocation2 [shape = 'u8[32768]{0}', space=vmem, size = 0x8000, scoped, tag = 'input window, operand 2, single buffered']
    #allocation3 [shape = 's32[1]{0}', space=sflag, size = 0x4, scoped, tag = 'scoped memory for attention_decoder_forward.1']
    #allocation4 [shape = 'u8[69632]{0}', space=vmem, size = 0x11000, scoped, tag = 'input window, operand 3, single buffered']
    #allocation5 [shape = 's32[1]{0}', space=sflag, size = 0x4, scoped, tag = 'scoped memory for attention_decoder_forward.1']
    %9 = vsyncpa [#allocation3], 0
    %10 = vsyncpa [#allocation5], 0
    // Predicated region
    $region2: #{attention_decoder_forward.1} parent=1 // pred_check
      _
    $region3: #{attention_decoder_forward.1} parent=1 // pred_check_branch
      %12 = sbr.rel (0) target = $region5
    $region4: #{attention_decoder_forward.1} parent=1 // pred_region
      _
    $region5: #{attention_decoder_forward.1} parent=1 // pred_fallthru
      _
    // Predicated region
    $region6: #{attention_decoder_forward.1} parent=1 // pred_check
      _
    $region7: #{attention_decoder_forward.1} parent=1 // pred_check_branch
      %14 = sbr.rel (0) target = $region9
    $region8: #{attention_decoder_forward.1} parent=1 // pred_region
      _
    $region9: #{attention_decoder_forward.1} parent=1 // pred_fallthru
      _
    // Predicated region
    $region10: #{attention_decoder_forward.1} parent=1 // pred_check
      _
    $region11: #{attention_decoder_forward.1} parent=1 // pred_check_branch
      %16 = sbr.rel (0) target = $region13
    $region12: #{attention_decoder_forward.1} parent=1 // pred_region
      %18 = vsyncadd [#allocation3], 0
      %s19 = sshll.u32 %s2, 4
      %s20 = int_to_ptr.hbm [resolvable:$true] %s19
      %s21 = sshll.u32 [#allocation2], 4
      %s22 = int_to_ptr.vmem [resolvable:$true] %s21
      %27 = dma.hbm_to_vmem [thread:$0]  %s20, 1024, %s22, [#allocation3], 128, 128, 8
    $region13: #{attention_decoder_forward.1} parent=1 // pred_fallthru
      _
    // Predicated region
    $region14: #{attention_decoder_forward.1} parent=1 // pred_check
      _
    $region15: #{attention_decoder_forward.1} parent=1 // pred_check_branch
      %29 = sbr.rel (0) target = $region17
    $region16: #{attention_decoder_forward.1} parent=1 // pred_region
      %31 = vsyncadd [#allocation5], 0
      %s32 = sshll.u32 %s3, 4
      %s33 = int_to_ptr.hbm [resolvable:$true] %s32
      %s34 = sshll.u32 [#allocation4], 4
      %s35 = int_to_ptr.vmem [resolvable:$true] %s34
      %40 = dma.hbm_to_vmem [thread:$0]  %s33, 2176, %s35, [#allocation5], 128, 128, 8
    $region17: #{attention_decoder_forward.1} parent=1 // pred_fallthru
      _
    // Predicated region
    $region18: #{attention_decoder_forward.1} parent=1 // pred_check
      _
    $region19: #{attention_decoder_forward.1} parent=1 // pred_check_branch
      %42 = sbr.rel (0) target = $region21
    $region20: #{attention_decoder_forward.1} parent=1 // pred_region
      %44 = dma.done [#allocation3], 1024
    $region21: #{attention_decoder_forward.1} parent=1 // pred_fallthru
      _
    // Predicated region
    $region22: #{attention_decoder_forward.1} parent=1 // pred_check
      _
    $region23: #{attention_decoder_forward.1} parent=1 // pred_check_branch
      %46 = sbr.rel (0) target = $region25
    $region24: #{attention_decoder_forward.1} parent=1 // pred_region
      %48 = dma.done [#allocation5], 2176
    $region25: #{attention_decoder_forward.1} parent=1 // pred_fallthru
      _
    %v49 = vld [vmem:[%s0] sm:$0xff]
    %v50 = vld [vmem:[%s1] sm:$0xff]
    %v51 = vld [vmem:[#allocation2] sm:$0xff]
    %v52 = vld [vmem:[#allocation2 + $0x8] sm:$0xff]
    %v53 = vld [vmem:[#allocation2 + $0x10] sm:$0xff]
    %v54 = vld [vmem:[#allocation2 + $0x18] sm:$0xff]
    %v55 = vld [vmem:[#allocation2 + $0x20] sm:$0xff]
    %v56 = vld [vmem:[#allocation2 + $0x28] sm:$0xff]
    %v57 = vld [vmem:[#allocation2 + $0x30] sm:$0xff]
    %v58 = vld [vmem:[#allocation2 + $0x38] sm:$0xff]
    %v59 = vld [vmem:[#allocation4] sm:$0xff]
    %v60 = vld [vmem:[#allocation4 + $0x8] sm:$0xff]
    %v61 = vld [vmem:[#allocation4 + $0x10] sm:$0xff]
    %v62 = vld [vmem:[#allocation4 + $0x18] sm:$0xff]
    %v63 = vld [vmem:[#allocation4 + $0x20] sm:$0xff]
    %v64 = vld [vmem:[#allocation4 + $0x28] sm:$0xff]
    %v65 = vld [vmem:[#allocation4 + $0x30] sm:$0x1]
    %v66 = vperm.slane %v65, 0
    %vm67 = vcmask 392192
    %v69 = vsel %vm67, %v49, 0
    %71 = vmatpush.msra.mxu0 0.0
    %72 = vmatpush.msra.mxu0 0.0
    %73 = vmatpush.msra.mxu0 0.0
    %74 = vmatpush.msra.mxu0 0.0
    %75 = vmatpush.msra.mxu0 0.0
    %76 = vmatpush.msra.mxu0 0.0
    %77 = vmatpush.msra.mxu0 0.0
    %78 = vmatpush.msra.mxu0 0.0
    %79 = vmatpush.msra.mxu0 0.0
    %80 = vmatpush.msra.mxu0 0.0
    %81 = vmatpush.msra.mxu0 %v64
    %82 = vmatpush.msra.mxu0 %v63
    %83 = vmatpush.msra.mxu0 %v62
    %84 = vmatpush.msra.mxu0 %v61
    %85 = vmatpush.msra.mxu0 %v60
    %86 = vmatpush.msra.mxu0 %v59
    %87 = vmatmul.f32.gmra.mxu0 %v69
    %v88 = vpop.f32.mrf.mxu0
    %v89 = vadd.f32 %v66, %v88
    %90 = vdwg.mxu0
    %v91 = vxor.u32 %v89, 2147483648
    %v92 = vmul.f32 %v91, 1.442695
    %v93 = vpow.pop %v92
    %v94 = vadd.f32 %v93, 1.0
    %v95 = vrcp.pop %v94
    %v96 = vmul.f32 %v94, %v95
    %v97 = vsub.f32 1.0, %v96
    %v98 = vmul.f32 %v95, %v97
    %v99 = vadd.f32 %v95, %v98
    %vm100 = vweird.f32 %v94
    %vm101 = vweird.f32 %v95
    %vm102 = vmor %vm100, %vm101
    %v103 = vsel %vm102, %v95, %v99
    %v104 = vand.u32 2147483647, %v94
    %vm105 = vcmp.eq.f32.partialorder %v104, 8.507059e+37
    %v106 = vand.u32 %v94, 2147483648
    %v107 = vor.u32 1.1754944e-38, %v106
    %v108 = vsel %vm105, %v107, %v103
    %v109 = vmul.f32 1.0, %v108
    %v110 = vtanh.pop %v89
    %112 = vrot.lane.b32.xlu0 %v50, 32
    %v113 = vpop.permute.xlu0 %112
    %v115 = vmul.f32 %v109, %v113
    %117 = vrot.lane.b32.xlu0 %v110, 64
    %v118 = vpop.permute.xlu0 %117
    %v120 = vmul.f32 %v109, %v118
    %122 = vrot.lane.b32.xlu0 %v120, 32
    %v123 = vpop.permute.xlu0 %122
    %v125 = vadd.f32 %v115, %v123
    %v126 = vtanh.pop %v125
    %128 = vrot.lane.b32.xlu0 %v126, 64
    %v129 = vpop.permute.xlu0 %128
    %v131 = vmul.f32 %v109, %v129
    %v132 = vld [vmem:[#allocation4 + $0x80] sm:$0x1]
    %v133 = vperm.slane %v132, 0
    %135 = vrot.lane.b32.xlu0 %v133, 96
    %v136 = vpop.permute.xlu0 %135
    %v138 = vmul.f32 %v131, %v136
    %140 = vrot.lane.b32.xlu0 %v138, 32
    %v141 = vpop.permute.xlu0 %140
    %vm143 = vcmask 261120
    %v144 = vsel %vm143, %v141, 0.0
    %145 = vadd.xlane.f32.xlu0 %v144
    %v146 = vpop.xlane.xlu0 %145
    %v147 = vmul.f32 %v51, %v136
    %v148 = vmul.f32 %v52, %v136
    %v149 = vmul.f32 %v53, %v136
    %v150 = vmul.f32 %v54, %v136
    %v151 = vmul.f32 %v55, %v136
    %v152 = vmul.f32 %v56, %v136
    %v153 = vmul.f32 %v57, %v136
    %v154 = vmul.f32 %v58, %v136
    %v155 = vsel %vm143, %v147, 0.0
    %156 = vadd.xlane.f32.xlu0 %v155
    %v157 = vpop.xlane.xlu0 %156
    %v158 = vsel %vm143, %v148, 0.0
    %159 = vadd.xlane.f32.xlu0 %v158
    %v160 = vpop.xlane.xlu0 %159
    %v161 = vsel %vm143, %v149, 0.0
    %162 = vadd.xlane.f32.xlu0 %v161
    %v163 = vpop.xlane.xlu0 %162
    %v164 = vsel %vm143, %v150, 0.0
    %165 = vadd.xlane.f32.xlu0 %v164
    %v166 = vpop.xlane.xlu0 %165
    %v167 = vsel %vm143, %v151, 0.0
    %168 = vadd.xlane.f32.xlu0 %v167
    %v169 = vpop.xlane.xlu0 %168
    %v170 = vsel %vm143, %v152, 0.0
    %171 = vadd.xlane.f32.xlu0 %v170
    %v172 = vpop.xlane.xlu0 %171
    %v173 = vsel %vm143, %v153, 0.0
    %174 = vadd.xlane.f32.xlu0 %v173
    %v175 = vpop.xlane.xlu0 %174
    %v176 = vsel %vm143, %v154, 0.0
    %177 = vadd.xlane.f32.xlu0 %v176
    %v178 = vpop.xlane.xlu0 %177
    %v187 = vlaneseq
    %v188 = vand.u32 %v187, 127
    %v189 = vperm.slane %v157, %v188
    %v190 = vperm.slane %v160, %v188
    %v191 = vperm.slane %v163, %v188
    %v192 = vperm.slane %v166, %v188
    %v193 = vperm.slane %v169, %v188
    %v194 = vperm.slane %v172, %v188
    %v195 = vperm.slane %v175, %v188
    %v196 = vperm.slane %v178, %v188
    %vm197 = vcmask 1041409
    %v198 = vsel %vm197, %v190, %v189
    %vm199 = vcmask 1042434
    %v200 = vsel %vm199, %v191, %v198
    %vm201 = vcmask 1043459
    %v202 = vsel %vm201, %v192, %v200
    %vm203 = vcmask 1044484
    %v204 = vsel %vm203, %v193, %v202
    %vm205 = vcmask 1045509
    %v206 = vsel %vm205, %v194, %v204
    %vm207 = vcmask 1046534
    %v208 = vsel %vm207, %v195, %v206
    %vm209 = vcmask 1047559
    %v210 = vsel %vm209, %v196, %v208
    %v212 = vadd.f32 %v146, %v210
    %214 = vrot.lane.b32.xlu0 %v132, 64
    %v215 = vpop.permute.xlu0 %214
    %s216 = vtos %v215
    %v217 = vstv %s216
    %v219 = vadd.f32 %v212, %v217
    %v220 = vtanh.pop %v219
    %vm221 = vcmask 64512
    %v222 = vsel %vm221, %v220, -inf
    %223 = vmax.xlane.f32.xlu0 %v222
    %v224 = vpop.xlane.xlu0 %223
    %v225 = vsub.f32 %v220, %v224
    %v226 = vmul.f32 %v225, 1.442695
    %v227 = vpow.pop %v226
    %v228 = vsel %vm221, %v227, 0.0
    %229 = vadd.xlane.f32.xlu0 %v228
    %v230 = vpop.xlane.xlu0 %229
    %v231 = vrcp.pop %v230
    %v232 = vmul.f32 %v230, %v231
    %v233 = vsub.f32 1.0, %v232
    %v234 = vmul.f32 %v231, %v233
    %v235 = vadd.f32 %v231, %v234
    %vm236 = vweird.f32 %v230
    %vm237 = vweird.f32 %v231
    %vm238 = vmor %vm236, %vm237
    %v239 = vsel %vm238, %v231, %v235
    %v240 = vand.u32 2147483647, %v230
    %vm241 = vcmp.eq.f32.partialorder %v240, 8.507059e+37
    %v242 = vand.u32 %v230, 2147483648
    %v243 = vor.u32 1.1754944e-38, %v242
    %v244 = vsel %vm241, %v243, %v239
    %v245 = vmul.f32 %v227, %v244
    %v246 = vperm.slane %v245, 0
    %v247 = vlaneseq
    %v248 = vshrl.u32 %v247, 7
    %250 = vset.pattern.permute.xlu0 %v248
    %251 = vperm.xlu0 %250, %v246
    %v252 = vpop.permute.xlu0 %251
    %v253 = vperm.slane %v245, 1
    %v254 = vlaneseq
    %v255 = vshrl.u32 %v254, 7
    %257 = vset.pattern.permute.xlu0 %v255
    %258 = vperm.xlu0 %257, %v253
    %v259 = vpop.permute.xlu0 %258
    %v260 = vperm.slane %v245, 2
    %v261 = vlaneseq
    %v262 = vshrl.u32 %v261, 7
    %264 = vset.pattern.permute.xlu0 %v262
    %265 = vperm.xlu0 %264, %v260
    %v266 = vpop.permute.xlu0 %265
    %v267 = vperm.slane %v245, 3
    %v268 = vlaneseq
    %v269 = vshrl.u32 %v268, 7
    %271 = vset.pattern.permute.xlu0 %v269
    %272 = vperm.xlu0 %271, %v267
    %v273 = vpop.permute.xlu0 %272
    %v274 = vperm.slane %v245, 4
    %v275 = vlaneseq
    %v276 = vshrl.u32 %v275, 7
    %278 = vset.pattern.permute.xlu0 %v276
    %279 = vperm.xlu0 %278, %v274
    %v280 = vpop.permute.xlu0 %279
    %v281 = vperm.slane %v245, 5
    %v282 = vlaneseq
    %v283 = vshrl.u32 %v282, 7
    %285 = vset.pattern.permute.xlu0 %v283
    %286 = vperm.xlu0 %285, %v281
    %v287 = vpop.permute.xlu0 %286
    %v288 = vperm.slane %v245, 6
    %v289 = vlaneseq
    %v290 = vshrl.u32 %v289, 7
    %292 = vset.pattern.permute.xlu0 %v290
    %293 = vperm.xlu0 %292, %v288
    %v294 = vpop.permute.xlu0 %293
    %v295 = vperm.slane %v245, 7
    %v296 = vlaneseq
    %v297 = vshrl.u32 %v296, 7
    %299 = vset.pattern.permute.xlu0 %v297
    %300 = vperm.xlu0 %299, %v295
    %v301 = vpop.permute.xlu0 %300
    %v302 = vmul.f32 %v252, %v51
    %v303 = vmul.f32 %v259, %v52
    %v304 = vmul.f32 %v266, %v53
    %v305 = vmul.f32 %v273, %v54
    %v306 = vmul.f32 %v280, %v55
    %v307 = vmul.f32 %v287, %v56
    %v308 = vmul.f32 %v294, %v57
    %v309 = vmul.f32 %v301, %v58
    %v310 = vsel %vm143, %v302, 0.0
    %v311 = vrot.slane %v310, 4
    %v312 = vadd.f32 %v310, %v311
    %v313 = vrot.slane %v312, 2
    %v314 = vadd.f32 %v312, %v313
    %v315 = vrot.slane %v314, 1
    %v316 = vadd.f32 %v314, %v315
    %v317 = vsel %vm143, %v303, 0.0
    %v318 = vrot.slane %v317, 4
    %v319 = vadd.f32 %v317, %v318
    %v320 = vrot.slane %v319, 2
    %v321 = vadd.f32 %v319, %v320
    %v322 = vrot.slane %v321, 1
    %v323 = vadd.f32 %v321, %v322
    %v324 = vsel %vm143, %v304, 0.0
    %v325 = vrot.slane %v324, 4
    %v326 = vadd.f32 %v324, %v325
    %v327 = vrot.slane %v326, 2
    %v328 = vadd.f32 %v326, %v327
    %v329 = vrot.slane %v328, 1
    %v330 = vadd.f32 %v328, %v329
    %v331 = vsel %vm143, %v305, 0.0
    %v332 = vrot.slane %v331, 4
    %v333 = vadd.f32 %v331, %v332
    %v334 = vrot.slane %v333, 2
    %v335 = vadd.f32 %v333, %v334
    %v336 = vrot.slane %v335, 1
    %v337 = vadd.f32 %v335, %v336
    %v338 = vsel %vm143, %v306, 0.0
    %v339 = vrot.slane %v338, 4
    %v340 = vadd.f32 %v338, %v339
    %v341 = vrot.slane %v340, 2
    %v342 = vadd.f32 %v340, %v341
    %v343 = vrot.slane %v342, 1
    %v344 = vadd.f32 %v342, %v343
    %v345 = vsel %vm143, %v307, 0.0
    %v346 = vrot.slane %v345, 4
    %v347 = vadd.f32 %v345, %v346
    %v348 = vrot.slane %v347, 2
    %v349 = vadd.f32 %v347, %v348
    %v350 = vrot.slane %v349, 1
    %v351 = vadd.f32 %v349, %v350
    %v352 = vsel %vm143, %v308, 0.0
    %v353 = vrot.slane %v352, 4
    %v354 = vadd.f32 %v352, %v353
    %v355 = vrot.slane %v354, 2
    %v356 = vadd.f32 %v354, %v355
    %v357 = vrot.slane %v356, 1
    %v358 = vadd.f32 %v356, %v357
    %v359 = vsel %vm143, %v309, 0.0
    %v360 = vrot.slane %v359, 4
    %v361 = vadd.f32 %v359, %v360
    %v362 = vrot.slane %v361, 2
    %v363 = vadd.f32 %v361, %v362
    %v364 = vrot.slane %v363, 1
    %v365 = vadd.f32 %v363, %v364
    %v374 = vsel %vm197, %v323, %v316
    %v375 = vsel %vm199, %v330, %v374
    %v376 = vsel %vm201, %v337, %v375
    %v377 = vsel %vm203, %v344, %v376
    %v378 = vsel %vm205, %v351, %v377
    %v379 = vsel %vm207, %v358, %v378
    %v380 = vsel %vm209, %v365, %v379
    %383 = vrot.lane.b32.xlu0 %v131, 64
    %v384 = vpop.permute.xlu0 %383
    %v386 = vsel %vm143, %v380, %v384
    %v387 = vld [vmem:[#allocation4 + $0x38] sm:$0xff]
    %v388 = vld [vmem:[#allocation4 + $0x40] sm:$0xff]
    %v389 = vld [vmem:[#allocation4 + $0x48] sm:$0xff]
    %v390 = vld [vmem:[#allocation4 + $0x50] sm:$0xff]
    %v391 = vld [vmem:[#allocation4 + $0x58] sm:$0xff]
    %v392 = vld [vmem:[#allocation4 + $0x60] sm:$0xff]
    %v393 = vld [vmem:[#allocation4 + $0x68] sm:$0xff]
    %v394 = vld [vmem:[#allocation4 + $0x70] sm:$0xff]
    %v395 = vld [vmem:[#allocation4 + $0x78] sm:$0x1]
    %v396 = vperm.slane %v395, 0
    %vm397 = vcmask 523264
    %v399 = vsel %vm397, %v386, 0
    %401 = vmatpush.msra.mxu0 0.0
    %402 = vmatpush.msra.mxu0 0.0
    %403 = vmatpush.msra.mxu0 0.0
    %404 = vmatpush.msra.mxu0 0.0
    %405 = vmatpush.msra.mxu0 0.0
    %406 = vmatpush.msra.mxu0 0.0
    %407 = vmatpush.msra.mxu0 0.0
    %408 = vmatpush.msra.mxu0 0.0
    %409 = vmatpush.msra.mxu0 %v394
    %410 = vmatpush.msra.mxu0 %v393
    %411 = vmatpush.msra.mxu0 %v392
    %412 = vmatpush.msra.mxu0 %v391
    %413 = vmatpush.msra.mxu0 %v390
    %414 = vmatpush.msra.mxu0 %v389
    %415 = vmatpush.msra.mxu0 %v388
    %416 = vmatpush.msra.mxu0 %v387
    %417 = vmatmul.f32.gmra.mxu0 %v399
    %v418 = vpop.f32.mrf.mxu0
    %v419 = vadd.f32 %v396, %v418
    %420 = vdwg.mxu0
    %421 = vst.msk [vmem:[%s4] sm:$0xff] %vm397, %v419
    %422 = vrot.lane.b32.xlu0 %v131, 32
    %v423 = vpop.permute.xlu0 %422
    %425 = vst.msk [vmem:[%s4 + $0x8] sm:$0xff] %vm143, %v423
    %427 = vrot.lane.b32.xlu0 %v125, 96
    %v428 = vpop.permute.xlu0 %427
    %430 = vst.msk [vmem:[%s4 + $0x10] sm:$0xff] %vm143, %v428
    %431 = vst.msk [vmem:[%s4 + $0x18] sm:$0xff] %vm221, %v245
    // Predicated region
    $region26: #{attention_decoder_forward.1} parent=1 // pred_check
      _
    $region27: #{attention_decoder_forward.1} parent=1 // pred_check_branch
      %433 = sbr.rel (0) target = $region29
    $region28: #{attention_decoder_forward.1} parent=1 // pred_region
      _
    $region29: #{attention_decoder_forward.1} parent=1 // pred_fallthru
      _
    // Predicated region
    $region30: #{attention_decoder_forward.1} parent=1 // pred_check
      _
    $region31: #{attention_decoder_forward.1} parent=1 // pred_check_branch
      %435 = sbr.rel (0) target = $region33
    $region32: #{attention_decoder_forward.1} parent=1 // pred_region
      _
    $region33: #{attention_decoder_forward.1} parent=1 // pred_fallthru
      _
    %436 = vsyncpa [#allocation3], 1
    %437 = vsyncpa [#allocation5], 1

</llo_original>
